<compile_context>
chip_gen: v6e
topology: v6e:2x2x1
jax: 0.10.0
libtpu: 0.0.40
codegen_flags: <defaults>
</compile_context>

<pallas_src>
import functools

import jax
import jax.numpy as jnp
from jax.experimental import pallas as pl
from jax.experimental.pallas import tpu as pltpu


def _lora_linear_kernel(scale, x_ref, wt_ref, b_ref, at_ref, bt_ref, o_ref):
    """One (batch-tile, out-tile) block: base linear + low-rank LoRA update."""
    x = x_ref[...]                                                     # (bm, Din)
    # Base path: x @ W^T  (W already passed transposed -> plain MXU matmul).
    acc = jnp.dot(x, wt_ref[...], preferred_element_type=jnp.float32)  # (bm, bn)
    # LoRA path: (x @ A^T) @ B^T.  K of the second matmul is `rank` (tiny),
    # so it is essentially free under the base matmul.
    xa = jnp.dot(x, at_ref[...], preferred_element_type=jnp.float32)   # (bm, r)
    lora = jnp.dot(xa.astype(bt_ref.dtype), bt_ref[...],
                   preferred_element_type=jnp.float32)                 # (bm, bn)
    out = acc + b_ref[...].astype(jnp.float32) + scale * lora
    o_ref[...] = out.astype(o_ref.dtype)


def _divisor_tile(dim, align, max_tile):
    """Largest multiple of `align` that divides `dim` and is <= max_tile.

    Falls back to the full dim when the dim cannot be tiled cleanly (Pallas
    allows block == full array dim even when unaligned to (8, 128))."""
    if dim <= max_tile:
        return dim
    if dim % align != 0:
        return dim
    best = None
    t = align
    while t <= max_tile:
        if dim % t == 0:
            best = t
        t += align
    return best if best is not None else dim


def _vmem_budget_bytes():
    """~70% of the chip's physical VMEM (leaves headroom for compiler scratch)."""
    try:
        cap = pltpu.get_tpu_info().vmem_capacity_bytes
    except Exception:
        cap = 64 << 20          # conservative, v7x-sized fallback
    return int(cap * 0.70)


def lora_linear(x, w, b, lora_a, lora_b, *, alpha=32, rank=None, bm=None, bn=None):
    """out = x @ W.T + b + (x @ A.T @ B.T) * (alpha / rank)."""
    B, Din = x.shape
    Dout = w.shape[0]
    if rank is None:
        rank = lora_a.shape[0]
    scale = float(alpha) / float(rank)

    # Pre-transpose once outside the kernel (store the weights like this in a
    # real model and the transposes disappear entirely).
    wt = jnp.transpose(w)          # (Din, Dout)
    at = jnp.transpose(lora_a)     # (Din, rank)
    bt = jnp.transpose(lora_b)     # (rank, Dout)
    b2 = b.reshape(1, Dout)

    xb = x.dtype.itemsize
    wb = wt.dtype.itemsize
    ob = xb
    budget = _vmem_budget_bytes()

    if bm is None:
        # Keep the double-buffered x tile well under half the budget;
        # target 512 rows (multiple of 8 for f32 sublane packing).
        bm_cap = max(8, budget // max(1, 4 * Din * xb))
        bm = _divisor_tile(B, 8, min(512, bm_cap))
    if bn is None:
        # Size the Dout tile so x + weight + bias + lora_B + out tiles
        # (all double-buffered by the BlockSpec pipeline) fit the VMEM budget.
        fixed = 2 * bm * Din * xb + Din * rank * wb + (2 << 20)
        per_bn = 2 * (Din * wb + rank * wb + bm * ob + ob)
        bn_cap = max(128, (budget - fixed) // max(1, per_bn))
        bn = _divisor_tile(Dout, 128, min(2048, bn_cap))
    assert B % bm == 0 and Dout % bn == 0

    grid = (B // bm, Dout // bn)

    flops = 2 * B * Din * Dout + 2 * B * Din * rank + 2 * B * rank * Dout
    bytes_accessed = (x.size * xb + wt.size * wb + b2.size * b2.dtype.itemsize
                      + at.size * wb + bt.size * wb + B * Dout * ob)

    kernel = functools.partial(_lora_linear_kernel, scale)

    return pl.pallas_call(
        kernel,
        out_shape=jax.ShapeDtypeStruct((B, Dout), x.dtype),
        grid_spec=pltpu.PrefetchScalarGridSpec(
            num_scalar_prefetch=0,
            grid=grid,
            in_specs=[
                # x tile: varies with batch axis only.
                pl.BlockSpec((bm, Din), lambda i, j: (i, 0)),
                # Base weight (pre-transposed), streamed along Dout.
                pl.BlockSpec((Din, bn), lambda i, j: (0, j)),
                # Bias tile.
                pl.BlockSpec((1, bn), lambda i, j: (0, j)),
                # lora_A^T: grid-invariant and tiny (Din x rank).
                pl.BlockSpec((Din, rank), lambda i, j: (0, 0)),
                # lora_B^T, streamed along Dout.
                pl.BlockSpec((rank, bn), lambda i, j: (0, j)),
            ],
            out_specs=pl.BlockSpec((bm, bn), lambda i, j: (i, j)),
        ),
        compiler_params=pltpu.CompilerParams(
            dimension_semantics=("parallel", "parallel"),
            vmem_limit_bytes=budget,
        ),
        cost_estimate=pl.CostEstimate(
            flops=flops, transcendentals=0, bytes_accessed=bytes_accessed),
    )(x, wt, b2, at, bt)


def lora_linear_ref(x, w, b, lora_a, lora_b, *, alpha=32, rank=8):
    """Pure-JAX reference mirroring the PyTorch forward exactly."""
    base = x @ w.T + b
    lora = (lora_b @ lora_a @ x.T).T * (alpha / rank)
    return base + lora


def _make_inputs(key, batch, in_channel, out_channel, rank):
    kw, kb, ka, kB, kx = jax.random.split(key, 5)
    # Frozen base nn.Linear(in_channel, out_channel) parameters.
    w = jax.random.normal(kw, (out_channel, in_channel), jnp.float32) * 0.05
    b = jax.random.normal(kb, (out_channel,), jnp.float32) * 0.05
    # LoRA params: A ~ N(0, 1/rank), B ~ N(0, 1)  (nn.init.normal_).
    lora_a = jax.random.normal(ka, (rank, in_channel), jnp.float32) * (1.0 / rank)
    lora_b = jax.random.normal(kB, (out_channel, rank), jnp.float32)
    x = jax.random.normal(kx, (batch, in_channel), jnp.float32)
    return x, w, b, lora_a, lora_b


if __name__ == "__main__":
    key = jax.random.PRNGKey(0)
    k1, k2, k3 = jax.random.split(key, 3)

    # Test 1: small, lane-aligned shapes with automatic tile selection.
    batch, din, dout, rank, alpha = 16, 128, 256, 8, 32
    x, w, b, la, lb = _make_inputs(k1, batch, din, dout, rank)
    out = jax.block_until_ready(lora_linear(x, w, b, la, lb, alpha=alpha, rank=rank))
    ref = lora_linear_ref(x, w, b, la, lb, alpha=alpha, rank=rank)
    assert out.shape == (batch, dout)
    assert jnp.allclose(out, ref, atol=1e-4, rtol=1e-4), "mismatch (auto tiles)"

    # Test 2: same problem with explicit small tiles -> 2x2 parallel grid,
    # exercising the batch- and Dout-tiling paths.
    out2 = jax.block_until_ready(
        lora_linear(x, w, b, la, lb, alpha=alpha, rank=rank, bm=8, bn=128))
    assert jnp.allclose(out2, ref, atol=1e-4, rtol=1e-4), "mismatch (2x2 grid)"

    # Test 3: ragged, unaligned shapes (blocks fall back to full dims).
    batch3, din3, dout3, rank3, alpha3 = 6, 48, 40, 4, 16
    x3, w3, b3, la3, lb3 = _make_inputs(k2, batch3, din3, dout3, rank3)
    out3 = jax.block_until_ready(
        lora_linear(x3, w3, b3, la3, lb3, alpha=alpha3, rank=rank3))
    ref3 = lora_linear_ref(x3, w3, b3, la3, lb3, alpha=alpha3, rank=rank3)
    assert out3.shape == (batch3, dout3)
    assert jnp.allclose(out3, ref3, atol=1e-4, rtol=1e-4), "mismatch (ragged)"

    print("KERNEL_OK")
</pallas_src>

<mosaic_0001>
module attributes {stable_mosaic.version = 11 : i64} {
  func.func @_lora_linear_kernel(%arg0: i32, %arg1: i32, %arg2: memref<16x128xf32, #tpu.memory_space<vmem>>, %arg3: memref<128x256xf32, #tpu.memory_space<vmem>>, %arg4: memref<1x256xf32, #tpu.memory_space<vmem>>, %arg5: memref<128x8xf32, #tpu.memory_space<vmem>>, %arg6: memref<8x256xf32, #tpu.memory_space<vmem>>, %arg7: memref<16x256xf32, #tpu.memory_space<vmem>>) attributes {dimension_semantics = [#tpu.dimension_semantics<parallel>, #tpu.dimension_semantics<parallel>], iteration_bounds = array<i64: 1, 1>, scalar_prefetch = 0 : i64, scratch_operands = 0 : i64, tpu.core_type = #tpu.core_type<tc>, window_params = [{transform_indices = @transform_0, window_bounds = array<i64: 16, 128>}, {transform_indices = @transform_1, window_bounds = array<i64: 128, 256>}, {transform_indices = @transform_2, window_bounds = array<i64: 1, 256>}, {pipeline_mode = #tpu.pipeline_mode<synchronous>, transform_indices = @transform_3, window_bounds = array<i64: 128, 8>}, {transform_indices = @transform_4, window_bounds = array<i64: 8, 256>}, {transform_indices = @transform_5, window_bounds = array<i64: 16, 256>}]} {
    %c0 = arith.constant 0 : index
    %c0_0 = arith.constant 0 : index
    %0 = vector.load %arg2[%c0, %c0_0] : memref<16x128xf32, #tpu.memory_space<vmem>>, vector<16x128xf32>
    %c0_1 = arith.constant 0 : index
    %c0_2 = arith.constant 0 : index
    %1 = vector.load %arg3[%c0_1, %c0_2] : memref<128x256xf32, #tpu.memory_space<vmem>>, vector<128x256xf32>
    %cst = arith.constant dense<0.000000e+00> : vector<16x256xf32>
    %2 = tpu.matmul %0, %1, %cst {dimension_numbers = #tpu.dot_dimension_numbers<[1], [0], [0], [1], [0, 0, 1, 1], [], []>} : vector<16x128xf32>, vector<128x256xf32>, vector<16x256xf32> -> vector<16x256xf32>
    %c0_3 = arith.constant 0 : index
    %c0_4 = arith.constant 0 : index
    %3 = vector.load %arg5[%c0_3, %c0_4] : memref<128x8xf32, #tpu.memory_space<vmem>>, vector<128x8xf32>
    %cst_5 = arith.constant dense<0.000000e+00> : vector<16x8xf32>
    %4 = tpu.matmul %0, %3, %cst_5 {dimension_numbers = #tpu.dot_dimension_numbers<[1], [0], [0], [1], [0, 0, 1, 1], [], []>} : vector<16x128xf32>, vector<128x8xf32>, vector<16x8xf32> -> vector<16x8xf32>
    %c0_6 = arith.constant 0 : index
    %c0_7 = arith.constant 0 : index
    %5 = vector.load %arg6[%c0_6, %c0_7] : memref<8x256xf32, #tpu.memory_space<vmem>>, vector<8x256xf32>
    %cst_8 = arith.constant dense<0.000000e+00> : vector<16x256xf32>
    %6 = tpu.matmul %4, %5, %cst_8 {dimension_numbers = #tpu.dot_dimension_numbers<[1], [0], [0], [1], [0, 0, 1, 1], [], []>} : vector<16x8xf32>, vector<8x256xf32>, vector<16x256xf32> -> vector<16x256xf32>
    %c0_9 = arith.constant 0 : index
    %c0_10 = arith.constant 0 : index
    %7 = vector.load %arg4[%c0_9, %c0_10] : memref<1x256xf32, #tpu.memory_space<vmem>>, vector<1x256xf32>
    %8 = vector.broadcast %7 : vector<1x256xf32> to vector<16x256xf32>
    %9 = arith.addf %2, %8 : vector<16x256xf32>
    %cst_11 = arith.constant 4.000000e+00 : f32
    %10 = vector.broadcast %cst_11 : f32 to vector<16x256xf32>
    %11 = arith.mulf %10, %6 : vector<16x256xf32>
    %12 = arith.addf %9, %11 : vector<16x256xf32>
    %c0_12 = arith.constant 0 : index
    %c0_13 = arith.constant 0 : index
    %13 = vector.load %arg7[%c0_12, %c0_13] : memref<16x256xf32, #tpu.memory_space<vmem>>, vector<16x256xf32>
    tpu.vector_store %arg7[%c0_12, %c0_13], %12 {strides = array<i32>} : memref<16x256xf32, #tpu.memory_space<vmem>>, vector<16x256xf32>,
    return
  }
  func.func @transform_0(%arg0: i32, %arg1: i32) -> (i32, i32) {
    %c0_i32 = arith.constant 0 : i32
    %c0_i32_0 = arith.constant 0 : i32
    return %arg0, %c0_i32 : i32, i32
  }
  func.func @transform_1(%arg0: i32, %arg1: i32) -> (i32, i32) {
    %c0_i32 = arith.constant 0 : i32
    %c0_i32_0 = arith.constant 0 : i32
    return %c0_i32, %arg1 : i32, i32
  }
  func.func @transform_2(%arg0: i32, %arg1: i32) -> (i32, i32) {
    %c0_i32 = arith.constant 0 : i32
    %c0_i32_0 = arith.constant 0 : i32
    return %c0_i32, %arg1 : i32, i32
  }
  func.func @transform_3(%arg0: i32, %arg1: i32) -> (i32, i32) {
    %c0_i32 = arith.constant 0 : i32
    %c0_i32_0 = arith.constant 0 : i32
    %c0_i32_1 = arith.constant 0 : i32
    return %c0_i32, %c0_i32_0 : i32, i32
  }
  func.func @transform_4(%arg0: i32, %arg1: i32) -> (i32, i32) {
    %c0_i32 = arith.constant 0 : i32
    %c0_i32_0 = arith.constant 0 : i32
    return %c0_i32, %arg1 : i32, i32
  }
  func.func @transform_5(%arg0: i32, %arg1: i32) -> (i32, i32) {
    %c0_i32 = arith.constant 0 : i32
    return %arg0, %arg1 : i32, i32
  }
}

</mosaic_0001>

<llo_original>
// kernel: tpu_custom_call.1
$region0: #{tpu_custom_call.1}
  #allocation0 [shape = 'u32[]', space=smem, size = 0x4, offset = 0x4, fixed_abs, tag = 'smem constant byte address 0x4 - core index']
  #allocation1 [shape = 'u32[144,128]{1,0:T(1,128)}', space=vmem, size = 0x12000, scoped, tag = 'internal scratch']
  %s0 = inlined_call_operand.vmem [shape: f32[16,128], index: 0, kind: input, shape index: {}]
  %s1 = inlined_call_operand.hbm [shape: f32[128,256], index: 1, kind: input, shape index: {}]
  %s2 = inlined_call_operand.vmem [shape: f32[1,256], index: 2, kind: input, shape index: {}]
  %s3 = inlined_call_operand.vmem [shape: f32[128,8], index: 3, kind: input, shape index: {}]
  %s4 = inlined_call_operand.vmem [shape: f32[8,256], index: 4, kind: input, shape index: {}]
  %s5 = inlined_call_operand.hbm [shape: f32[16,256], index: 5, kind: output, shape index: {}]
  %s6 = sld [smem:[#allocation0]]
  $region34: #{tpu_custom_call.1} parent=0
    _
  %s8 = ssub.s32 1, %s6
  %s9 = scalar_select 0, %s8, %s6
  $region1: #{tpu_custom_call.1} parent=0
    #allocation2 [shape = 'u8[131072]{0}', space=vmem, size = 0x20000, scoped, tag = 'input window, operand 1, single buffered']
    #allocation3 [shape = 's32[1]{0}', space=sflag, size = 0x4, scoped, tag = 'scoped memory for tpu_custom_call.1']
    #allocation4 [shape = 's32[1]{0}', space=sflag, size = 0x4, scoped, tag = 'scoped memory for tpu_custom_call.1']
    #allocation5 [shape = 'u8[16384]{0}', space=vmem, size = 0x4000, scoped, tag = 'output window, operand 0, single buffered']
    %10 = vsyncpa [#allocation3], 0
    %11 = vsyncpa [#allocation4], 0
    // Predicated region
    $region2: #{tpu_custom_call.1} parent=1 // pred_check
      _
    $region3: #{tpu_custom_call.1} parent=1 // pred_check_branch
      %13 = sbr.rel (0) target = $region5
    $region4: #{tpu_custom_call.1} parent=1 // pred_region
      _
    $region5: #{tpu_custom_call.1} parent=1 // pred_fallthru
      _
    // Predicated region
    $region6: #{tpu_custom_call.1} parent=1 // pred_check
      _
    $region7: #{tpu_custom_call.1} parent=1 // pred_check_branch
      %15 = sbr.rel (0) target = $region9
    $region8: #{tpu_custom_call.1} parent=1 // pred_region
      %s17 = ssub.s32 4096, 4096
      %18 = vsyncadd [#allocation3], %s17
      %s19 = sshll.u32 [#allocation2], 4
      %s20 = int_to_ptr.vmem [resolvable:$true] %s19
      %25 = dma.hbm_to_vmem [thread:$0]  %s1, 4096, %s20, [#allocation3], 256, 256, 16
    $region9: #{tpu_custom_call.1} parent=1 // pred_fallthru
      _
    // Predicated region
    $region10: #{tpu_custom_call.1} parent=1 // pred_check
      _
    $region11: #{tpu_custom_call.1} parent=1 // pred_check_branch
      %27 = sbr.rel (0) target = $region13
    $region12: #{tpu_custom_call.1} parent=1 // pred_region
      _
    $region13: #{tpu_custom_call.1} parent=1 // pred_fallthru
      _
    // Predicated region
    $region14: #{tpu_custom_call.1} parent=1 // pred_check
      _
    $region15: #{tpu_custom_call.1} parent=1 // pred_check_branch
      %29 = sbr.rel (0) target = $region17
    $region16: #{tpu_custom_call.1} parent=1 // pred_region
      _
    $region17: #{tpu_custom_call.1} parent=1 // pred_fallthru
      _
    // Predicated region
    $region18: #{tpu_custom_call.1} parent=1 // pred_check
      _
    $region19: #{tpu_custom_call.1} parent=1 // pred_check_branch
      %31 = sbr.rel (0) target = $region21
    $region20: #{tpu_custom_call.1} parent=1 // pred_region
      _
    $region21: #{tpu_custom_call.1} parent=1 // pred_fallthru
      _
    // Predicated region
    $region22: #{tpu_custom_call.1} parent=1 // pred_check
      _
    $region23: #{tpu_custom_call.1} parent=1 // pred_check_branch
      %33 = sbr.rel (0) target = $region25
    $region24: #{tpu_custom_call.1} parent=1 // pred_region
      %34 = dma.done [#allocation3], 4096
    $region25: #{tpu_custom_call.1} parent=1 // pred_fallthru
      _
    %v35 = vld [vmem:[%s0] sm:$0xff]
    %v36 = vld [vmem:[%s0 + $0x8] sm:$0xff]
    %v37 = vld [vmem:[#allocation2] sm:$0xff]
    %v38 = vld [vmem:[#allocation2 + $0x8] sm:$0xff]
    %v39 = vld [vmem:[#allocation2 + $0x10] sm:$0xff]
    %v40 = vld [vmem:[#allocation2 + $0x18] sm:$0xff]
    %v41 = vld [vmem:[#allocation2 + $0x20] sm:$0xff]
    %v42 = vld [vmem:[#allocation2 + $0x28] sm:$0xff]
    %v43 = vld [vmem:[#allocation2 + $0x30] sm:$0xff]
    %v44 = vld [vmem:[#allocation2 + $0x38] sm:$0xff]
    %v45 = vld [vmem:[#allocation2 + $0x40] sm:$0xff]
    %v46 = vld [vmem:[#allocation2 + $0x48] sm:$0xff]
    %v47 = vld [vmem:[#allocation2 + $0x50] sm:$0xff]
    %v48 = vld [vmem:[#allocation2 + $0x58] sm:$0xff]
    %v49 = vld [vmem:[#allocation2 + $0x60] sm:$0xff]
    %v50 = vld [vmem:[#allocation2 + $0x68] sm:$0xff]
    %v51 = vld [vmem:[#allocation2 + $0x70] sm:$0xff]
    %v52 = vld [vmem:[#allocation2 + $0x78] sm:$0xff]
    %v53 = vld [vmem:[#allocation2 + $0x80] sm:$0xff]
    %v54 = vld [vmem:[#allocation2 + $0x88] sm:$0xff]
    %v55 = vld [vmem:[#allocation2 + $0x90] sm:$0xff]
    %v56 = vld [vmem:[#allocation2 + $0x98] sm:$0xff]
    %v57 = vld [vmem:[#allocation2 + $0xa0] sm:$0xff]
    %v58 = vld [vmem:[#allocation2 + $0xa8] sm:$0xff]
    %v59 = vld [vmem:[#allocation2 + $0xb0] sm:$0xff]
    %v60 = vld [vmem:[#allocation2 + $0xb8] sm:$0xff]
    %v61 = vld [vmem:[#allocation2 + $0xc0] sm:$0xff]
    %v62 = vld [vmem:[#allocation2 + $0xc8] sm:$0xff]
    %v63 = vld [vmem:[#allocation2 + $0xd0] sm:$0xff]
    %v64 = vld [vmem:[#allocation2 + $0xd8] sm:$0xff]
    %v65 = vld [vmem:[#allocation2 + $0xe0] sm:$0xff]
    %v66 = vld [vmem:[#allocation2 + $0xe8] sm:$0xff]
    %v67 = vld [vmem:[#allocation2 + $0xf0] sm:$0xff]
    %v68 = vld [vmem:[#allocation2 + $0xf8] sm:$0xff]
    %v69 = vld [vmem:[%s3] sm:$0xff]
    %v70 = vld [vmem:[%s3 + $0x8] sm:$0xff]
    %v71 = vld [vmem:[%s3 + $0x10] sm:$0xff]
    %v72 = vld [vmem:[%s3 + $0x18] sm:$0xff]
    %v73 = vld [vmem:[%s3 + $0x20] sm:$0xff]
    %v74 = vld [vmem:[%s3 + $0x28] sm:$0xff]
    %v75 = vld [vmem:[%s3 + $0x30] sm:$0xff]
    %v76 = vld [vmem:[%s3 + $0x38] sm:$0xff]
    %v77 = vld [vmem:[%s3 + $0x40] sm:$0xff]
    %v78 = vld [vmem:[%s3 + $0x48] sm:$0xff]
    %v79 = vld [vmem:[%s3 + $0x50] sm:$0xff]
    %v80 = vld [vmem:[%s3 + $0x58] sm:$0xff]
    %v81 = vld [vmem:[%s3 + $0x60] sm:$0xff]
    %v82 = vld [vmem:[%s3 + $0x68] sm:$0xff]
    %v83 = vld [vmem:[%s3 + $0x70] sm:$0xff]
    %v84 = vld [vmem:[%s3 + $0x78] sm:$0xff]
    %85 = vmatprep.subr.mxu0 0.0
    %86 = vmatpush1.msra.mxu0 %v84
    %87 = vmatprep.subr.mxu0 0.0
    %88 = vmatpush1.msra.mxu0 %v83
    %89 = vmatprep.subr.mxu0 0.0
    %90 = vmatpush1.msra.mxu0 %v82
    %91 = vmatprep.subr.mxu0 0.0
    %92 = vmatpush1.msra.mxu0 %v81
    %93 = vmatprep.subr.mxu0 0.0
    %94 = vmatpush1.msra.mxu0 %v80
    %95 = vmatprep.subr.mxu0 0.0
    %96 = vmatpush1.msra.mxu0 %v79
    %97 = vmatprep.subr.mxu0 0.0
    %98 = vmatpush1.msra.mxu0 %v78
    %99 = vmatprep.subr.mxu0 0.0
    %100 = vmatpush1.msra.mxu0 %v77
    %101 = vmatprep.subr.mxu0 0.0
    %102 = vmatpush1.msra.mxu0 %v76
    %103 = vmatprep.subr.mxu0 0.0
    %104 = vmatpush1.msra.mxu0 %v75
    %105 = vmatprep.subr.mxu0 0.0
    %106 = vmatpush1.msra.mxu0 %v74
    %107 = vmatprep.subr.mxu0 0.0
    %108 = vmatpush1.msra.mxu0 %v73
    %109 = vmatprep.subr.mxu0 0.0
    %110 = vmatpush1.msra.mxu0 %v72
    %111 = vmatprep.subr.mxu0 0.0
    %112 = vmatpush1.msra.mxu0 %v71
    %113 = vmatprep.subr.mxu0 0.0
    %114 = vmatpush1.msra.mxu0 %v70
    %115 = vmatprep.subr.mxu0 0.0
    %116 = vmatpush1.msra.mxu0 %v69
    %117 = vmatprep.subr.mxu0 0.0
    %118 = vmatpush2.msra.mxu0 0.0
    %119 = vmatprep.subr.mxu0 0.0
    %120 = vmatpush2.msra.mxu0 0.0
    %121 = vmatprep.subr.mxu0 0.0
    %122 = vmatpush2.msra.mxu0 0.0
    %123 = vmatprep.subr.mxu0 0.0
    %124 = vmatpush2.msra.mxu0 0.0
    %125 = vmatprep.subr.mxu0 0.0
    %126 = vmatpush2.msra.mxu0 0.0
    %127 = vmatprep.subr.mxu0 0.0
    %128 = vmatpush2.msra.mxu0 0.0
    %129 = vmatprep.subr.mxu0 0.0
    %130 = vmatpush2.msra.mxu0 0.0
    %131 = vmatprep.subr.mxu0 0.0
    %132 = vmatpush2.msra.mxu0 0.0
    %133 = vmatprep.subr.mxu0 0.0
    %134 = vmatpush2.msra.mxu0 0.0
    %135 = vmatprep.subr.mxu0 0.0
    %136 = vmatpush2.msra.mxu0 0.0
    %137 = vmatprep.subr.mxu0 0.0
    %138 = vmatpush2.msra.mxu0 0.0
    %139 = vmatprep.subr.mxu0 0.0
    %140 = vmatpush2.msra.mxu0 0.0
    %141 = vmatprep.subr.mxu0 0.0
    %142 = vmatpush2.msra.mxu0 0.0
    %143 = vmatprep.subr.mxu0 0.0
    %144 = vmatpush2.msra.mxu0 0.0
    %145 = vmatprep.subr.mxu0 0.0
    %146 = vmatpush2.msra.mxu0 0.0
    %147 = vmatprep.subr.mxu0 0.0
    %148 = vmatpush2.msra.mxu0 0.0
    %149 = vmatprep.mubr.f32.mxu0 0.0
    %150 = vmatmul.mubr.f32.gmra.mxu0 %v35
    %v151 = vpop.f32.mrf.mxu0
    %v152 = vadd.f32 0.0, %v151
    %v153 = vpop.f32.mrf.mxu0
    %154 = vmatprep.mubr.f32.mxu0 0.0
    %155 = vmatmul.mubr.f32.gmra.mxu0 %v36
    %v156 = vpop.f32.mrf.mxu0
    %v157 = vadd.f32 0.0, %v156
    %v158 = vpop.f32.mrf.mxu0
    %159 = vdwg.mxu0
    %v160 = vld [vmem:[%s4] sm:$0xff]
    %v161 = vld [vmem:[%s4 + $0x8] sm:$0xff]
    %vm162 = vcmask 64512
    %v164 = vsel %vm162, %v152, 0
    %v167 = vsel %vm162, %v157, 0
    %169 = vmatprep.subr.mxu0 0.0
    %170 = vmatpush1.msra.mxu0 0.0
    %171 = vmatprep.subr.mxu0 0.0
    %172 = vmatpush1.msra.mxu0 0.0
    %173 = vmatprep.subr.mxu0 0.0
    %174 = vmatpush1.msra.mxu0 0.0
    %175 = vmatprep.subr.mxu0 0.0
    %176 = vmatpush1.msra.mxu0 0.0
    %177 = vmatprep.subr.mxu0 0.0
    %178 = vmatpush1.msra.mxu0 0.0
    %179 = vmatprep.subr.mxu0 0.0
    %180 = vmatpush1.msra.mxu0 0.0
    %181 = vmatprep.subr.mxu0 0.0
    %182 = vmatpush1.msra.mxu0 0.0
    %183 = vmatprep.subr.mxu0 0.0
    %184 = vmatpush1.msra.mxu0 0.0
    %185 = vmatprep.subr.mxu0 0.0
    %186 = vmatpush1.msra.mxu0 0.0
    %187 = vmatprep.subr.mxu0 0.0
    %188 = vmatpush1.msra.mxu0 0.0
    %189 = vmatprep.subr.mxu0 0.0
    %190 = vmatpush1.msra.mxu0 0.0
    %191 = vmatprep.subr.mxu0 0.0
    %192 = vmatpush1.msra.mxu0 0.0
    %193 = vmatprep.subr.mxu0 0.0
    %194 = vmatpush1.msra.mxu0 0.0
    %195 = vmatprep.subr.mxu0 0.0
    %196 = vmatpush1.msra.mxu0 0.0
    %197 = vmatprep.subr.mxu0 0.0
    %198 = vmatpush1.msra.mxu0 0.0
    %199 = vmatprep.subr.mxu0 %v161
    %200 = vmatpush1.msra.mxu0 %v160
    %201 = vmatprep.subr.mxu0 0.0
    %202 = vmatpush2.msra.mxu0 0.0
    %203 = vmatprep.subr.mxu0 0.0
    %204 = vmatpush2.msra.mxu0 0.0
    %205 = vmatprep.subr.mxu0 0.0
    %206 = vmatpush2.msra.mxu0 0.0
    %207 = vmatprep.subr.mxu0 0.0
    %208 = vmatpush2.msra.mxu0 0.0
    %209 = vmatprep.subr.mxu0 0.0
    %210 = vmatpush2.msra.mxu0 0.0
    %211 = vmatprep.subr.mxu0 0.0
    %212 = vmatpush2.msra.mxu0 0.0
    %213 = vmatprep.subr.mxu0 0.0
    %214 = vmatpush2.msra.mxu0 0.0
    %215 = vmatprep.subr.mxu0 0.0
    %216 = vmatpush2.msra.mxu0 0.0
    %217 = vmatprep.subr.mxu0 0.0
    %218 = vmatpush2.msra.mxu0 0.0
    %219 = vmatprep.subr.mxu0 0.0
    %220 = vmatpush2.msra.mxu0 0.0
    %221 = vmatprep.subr.mxu0 0.0
    %222 = vmatpush2.msra.mxu0 0.0
    %223 = vmatprep.subr.mxu0 0.0
    %224 = vmatpush2.msra.mxu0 0.0
    %225 = vmatprep.subr.mxu0 0.0
    %226 = vmatpush2.msra.mxu0 0.0
    %227 = vmatprep.subr.mxu0 0.0
    %228 = vmatpush2.msra.mxu0 0.0
    %229 = vmatprep.subr.mxu0 0.0
    %230 = vmatpush2.msra.mxu0 0.0
    %231 = vmatprep.subr.mxu0 0.0
    %232 = vmatpush2.msra.mxu0 0.0
    %233 = vmatprep.mubr.f32.mxu0 0.0
    %234 = vmatmul.mubr.f32.gmra.mxu0 %v164
    %v235 = vpop.f32.mrf.mxu0
    %v236 = vadd.f32 0.0, %v235
    %v237 = vpop.f32.mrf.mxu0
    %v238 = vadd.f32 0.0, %v237
    %239 = vmatprep.mubr.f32.mxu0 0.0
    %240 = vmatmul.mubr.f32.gmra.mxu0 %v167
    %v241 = vpop.f32.mrf.mxu0
    %v242 = vadd.f32 0.0, %v241
    %v243 = vpop.f32.mrf.mxu0
    %v244 = vadd.f32 0.0, %v243
    %245 = vdwg.mxu0
    %v246 = vld [vmem:[%s2] sm:$0x3]
    %v248 = vlaneseq
    %v249 = vshrl.u32 %v248, 7
    %v250 = vsub.s32 0, %v249
    %v251 = vrot.slane %v246, %v250
    %v252 = vlaneseq
    %v253 = vshrl.u32 %v252, 7
    %v254 = vsub.s32 1, %v253
    %v255 = vrot.slane %v246, %v254
    %258 = vmatprep.subr.mxu0 %v68
    %259 = vmatpush1.msra.mxu0 %v67
    %260 = vmatprep.subr.mxu0 %v66
    %261 = vmatpush1.msra.mxu0 %v65
    %262 = vmatprep.subr.mxu0 %v64
    %263 = vmatpush1.msra.mxu0 %v63
    %264 = vmatprep.subr.mxu0 %v62
    %265 = vmatpush1.msra.mxu0 %v61
    %266 = vmatprep.subr.mxu0 %v60
    %267 = vmatpush1.msra.mxu0 %v59
    %268 = vmatprep.subr.mxu0 %v58
    %269 = vmatpush1.msra.mxu0 %v57
    %270 = vmatprep.subr.mxu0 %v56
    %271 = vmatpush1.msra.mxu0 %v55
    %272 = vmatprep.subr.mxu0 %v54
    %273 = vmatpush1.msra.mxu0 %v53
    %274 = vmatprep.subr.mxu0 %v52
    %275 = vmatpush1.msra.mxu0 %v51
    %276 = vmatprep.subr.mxu0 %v50
    %277 = vmatpush1.msra.mxu0 %v49
    %278 = vmatprep.subr.mxu0 %v48
    %279 = vmatpush1.msra.mxu0 %v47
    %280 = vmatprep.subr.mxu0 %v46
    %281 = vmatpush1.msra.mxu0 %v45
    %282 = vmatprep.subr.mxu0 %v44
    %283 = vmatpush1.msra.mxu0 %v43
    %284 = vmatprep.subr.mxu0 %v42
    %285 = vmatpush1.msra.mxu0 %v41
    %286 = vmatprep.subr.mxu0 %v40
    %287 = vmatpush1.msra.mxu0 %v39
    %288 = vmatprep.subr.mxu0 %v38
    %289 = vmatpush1.msra.mxu0 %v37
    %290 = vmatprep.subr.mxu0 0.0
    %291 = vmatpush2.msra.mxu0 0.0
    %292 = vmatprep.subr.mxu0 0.0
    %293 = vmatpush2.msra.mxu0 0.0
    %294 = vmatprep.subr.mxu0 0.0
    %295 = vmatpush2.msra.mxu0 0.0
    %296 = vmatprep.subr.mxu0 0.0
    %297 = vmatpush2.msra.mxu0 0.0
    %298 = vmatprep.subr.mxu0 0.0
    %299 = vmatpush2.msra.mxu0 0.0
    %300 = vmatprep.subr.mxu0 0.0
    %301 = vmatpush2.msra.mxu0 0.0
    %302 = vmatprep.subr.mxu0 0.0
    %303 = vmatpush2.msra.mxu0 0.0
    %304 = vmatprep.subr.mxu0 0.0
    %305 = vmatpush2.msra.mxu0 0.0
    %306 = vmatprep.subr.mxu0 0.0
    %307 = vmatpush2.msra.mxu0 0.0
    %308 = vmatprep.subr.mxu0 0.0
    %309 = vmatpush2.msra.mxu0 0.0
    %310 = vmatprep.subr.mxu0 0.0
    %311 = vmatpush2.msra.mxu0 0.0
    %312 = vmatprep.subr.mxu0 0.0
    %313 = vmatpush2.msra.mxu0 0.0
    %314 = vmatprep.subr.mxu0 0.0
    %315 = vmatpush2.msra.mxu0 0.0
    %316 = vmatprep.subr.mxu0 0.0
    %317 = vmatpush2.msra.mxu0 0.0
    %318 = vmatprep.subr.mxu0 0.0
    %319 = vmatpush2.msra.mxu0 0.0
    %320 = vmatprep.subr.mxu0 0.0
    %321 = vmatpush2.msra.mxu0 0.0
    %322 = vmatprep.mubr.f32.mxu0 0.0
    %323 = vmatmul.mubr.f32.gmra.mxu0 %v35
    %v324 = vpop.f32.mrf.mxu0
    %v325 = vadd.f32 %v251, %v324
    %v326 = vpop.f32.mrf.mxu0
    %v327 = vadd.f32 %v255, %v326
    %328 = vmatprep.mubr.f32.mxu0 0.0
    %329 = vmatmul.mubr.f32.gmra.mxu0 %v36
    %v330 = vpop.f32.mrf.mxu0
    %v331 = vadd.f32 %v251, %v330
    %v332 = vpop.f32.mrf.mxu0
    %v333 = vadd.f32 %v255, %v332
    %334 = vdwg.mxu0
    %v335 = vmul.f32 %v236, 4.0
    %v336 = vmul.f32 %v238, 4.0
    %v337 = vmul.f32 %v242, 4.0
    %v338 = vmul.f32 %v244, 4.0
    %v339 = vadd.f32 %v325, %v335
    %v340 = vadd.f32 %v327, %v336
    %v341 = vadd.f32 %v331, %v337
    %v342 = vadd.f32 %v333, %v338
    %343 = vst [vmem:[#allocation5] sm:$0xff] %v339
    %344 = vst [vmem:[#allocation5 + $0x8] sm:$0xff] %v340
    %345 = vst [vmem:[#allocation5 + $0x10] sm:$0xff] %v341
    %346 = vst [vmem:[#allocation5 + $0x18] sm:$0xff] %v342
    // Predicated region
    $region26: #{tpu_custom_call.1} parent=1 // pred_check
      _
    $region27: #{tpu_custom_call.1} parent=1 // pred_check_branch
      %348 = sbr.rel (0) target = $region29
    $region28: #{tpu_custom_call.1} parent=1 // pred_region
      %s350 = ssub.s32 512, 512
      %351 = vsyncadd [#allocation4], %s350
      %s352 = sshll.u32 [#allocation5], 4
      %s353 = int_to_ptr.vmem [resolvable:$true] %s352
      %358 = dma.vmem_to_hbm [thread:$0]  %s353, 512, %s5, [#allocation4], 256, 256, 16
    $region29: #{tpu_custom_call.1} parent=1 // pred_fallthru
      _
    // Predicated region
    $region30: #{tpu_custom_call.1} parent=1 // pred_check
      _
    $region31: #{tpu_custom_call.1} parent=1 // pred_check_branch
      %360 = sbr.rel (0) target = $region33
    $region32: #{tpu_custom_call.1} parent=1 // pred_region
      %361 = dma.done [#allocation4], 512
    $region33: #{tpu_custom_call.1} parent=1 // pred_fallthru
      _
    %362 = vsyncpa [#allocation3], 1
    %363 = vsyncpa [#allocation4], 1

</llo_original>
